<compile_context>
chip_gen: v5e
topology: v5e:2x2
jax: 0.10.0
libtpu: 0.0.40
codegen_flags: <defaults>
</compile_context>

<pallas_src>
import functools

import jax
import jax.numpy as jnp
from jax.experimental import pallas as pl
from jax.experimental.pallas import tpu as pltpu

_VMEM_LIMIT_BYTES = 48 * 1024 * 1024   # < 64 MiB v7x physical; above all defaults
_TILE_BYTES = 4 * 1024 * 1024          # target bytes per streamed block
_FUSE_BUDGET_BYTES = 32 * 1024 * 1024  # budget for the resident per-batch cache


# ----------------------------------------------------------- tile selection --

def _pick_spatial_tile(m, rows, itemsize, budget=_TILE_BYTES):
    """Largest multiple-of-128 divisor of m with rows*tile*itemsize <= budget."""
    if m % 128 != 0:
        # TODO(synk): for small non-multiple-of-128 maps (7x7, 14x14) with large
        # C, a [B, M, C] layout (C on the lane axis) would give denser stores;
        # here we fall back to a full-extent spatial block (legal, correct).
        return m
    max_tile = max(128, budget // max(rows * itemsize, 1))
    best = 128
    for t in range(128, m + 1, 128):
        if m % t == 0 and t <= max_tile:
            best = t
    return best


def _largest_divisor(n, upper, multiple_of=1):
    upper = min(n, upper)
    for d in range(upper, 0, -1):
        if n % d == 0 and d % multiple_of == 0:
            return d
    return None


def _pick_row_tile(n, m_tile, itemsize, budget=_TILE_BYTES):
    """Largest multiple-of-8 divisor of n fitting the byte budget; else full n."""
    max_rows = max(8, budget // max(m_tile * itemsize, 1))
    cand = _largest_divisor(n, max_rows, multiple_of=8)
    return cand if cand is not None else n


# ---------------------------------------------------------------- kernels ----

def _se_gate(y_col, w1_ref, b1_ref, w2_ref, b2_ref):
    """Column-form SE MLP: y (C,1) -> sigmoid(w2 @ relu(w1 @ y + b1) + b2), (C,1)."""
    h = jnp.dot(w1_ref[...], y_col, preferred_element_type=jnp.float32) + b1_ref[...]
    h = jnp.maximum(h, 0.0)
    z = jnp.dot(w2_ref[...], h, preferred_element_type=jnp.float32) + b2_ref[...]
    return jax.nn.sigmoid(z)


def _fused_se_kernel(x_ref, w1_ref, b1_ref, w2_ref, b2_ref, o_ref, acc_ref, *,
                     inv_m, m_tile):
    """Single-pass SE: stream tiles into the resident out block, gate in place.

    x_ref: (1, C, m_tile)  one spatial tile of one batch element
    o_ref: (1, C, M)       resident output block (doubles as the x cache)
    acc_ref: (C, 1) f32    running per-channel spatial sum
    """
    t = pl.program_id(1)

    @pl.when(t == 0)
    def _():
        acc_ref[...] = jnp.zeros_like(acc_ref)

    xt = x_ref[0]                                                     # (C, m_tile)
    acc_ref[...] += jnp.sum(xt.astype(jnp.float32), axis=1, keepdims=True)
    off = pl.multiple_of(t * m_tile, m_tile)
    o_ref[0, :, pl.ds(off, m_tile)] = xt                              # cache tile

    @pl.when(t == pl.num_programs(1) - 1)
    def _():
        s = _se_gate(acc_ref[...] * inv_m, w1_ref, b1_ref, w2_ref, b2_ref)  # (C,1)
        o_ref[0] = (o_ref[0].astype(jnp.float32) * s).astype(o_ref.dtype)


def _gate_kernel(x_ref, w1_ref, b1_ref, w2_ref, b2_ref, s_ref, acc_ref, *, inv_m):
    """Pass 1 (fallback): per-channel mean + SE MLP -> gate s[b, c] in (0, 1)."""
    t = pl.program_id(1)

    @pl.when(t == 0)
    def _():
        acc_ref[...] = jnp.zeros_like(acc_ref)

    acc_ref[...] += jnp.sum(x_ref[0].astype(jnp.float32), axis=1, keepdims=True)

    @pl.when(t == pl.num_programs(1) - 1)
    def _():
        s_ref[0] = _se_gate(acc_ref[...] * inv_m, w1_ref, b1_ref, w2_ref, b2_ref)


def _scale_kernel(x_ref, s_ref, o_ref):
    """Pass 2 (fallback): o = x * s, dense [B*C, M] layout, s broadcast over lanes."""
    o_ref[...] = (x_ref[...].astype(jnp.float32) * s_ref[...]).astype(o_ref.dtype)


# ------------------------------------------------------------------ forward --

def inse_attention(params, x, *, donate_x=False, force_two_pass=False):
    B, C, H, W = x.shape
    M = H * W
    N = B * C
    dtype = x.dtype
    itemsize = jnp.dtype(dtype).itemsize
    inv_m = 1.0 / M

    w1, b1, w2, b2 = params["w1"], params["b1"], params["w2"], params["b2"]
    cr = w1.shape[0]

    c_pad = -(-C // 8) * 8                       # sublane padding of C in VMEM
    m_tile = _pick_spatial_tile(M, c_pad, itemsize)
    n_m = M // m_tile

    x3 = x.reshape(B, C, M)
    weight_specs = [
        pl.BlockSpec((cr, C), lambda b, t: (0, 0)),
        pl.BlockSpec((cr, 1), lambda b, t: (0, 0)),
        pl.BlockSpec((C, cr), lambda b, t: (0, 0)),
        pl.BlockSpec((C, 1), lambda b, t: (0, 0)),
    ]
    make_cp = functools.partial(pltpu.CompilerParams,
                                vmem_limit_bytes=_VMEM_LIMIT_BYTES)

    # --- fused single pass when the per-batch slab fits in VMEM ---------------
    fuse_bytes = (2 * c_pad * M + 2 * c_pad * m_tile) * itemsize
    if not force_two_pass and fuse_bytes <= _FUSE_BUDGET_BYTES:
        out = pl.pallas_call(
            functools.partial(_fused_se_kernel, inv_m=inv_m, m_tile=m_tile),
            out_shape=jax.ShapeDtypeStruct((B, C, M), dtype),
            grid=(B, n_m),
            in_specs=[pl.BlockSpec((1, C, m_tile), lambda b, t: (b, 0, t))]
                     + weight_specs,
            out_specs=pl.BlockSpec((1, C, M), lambda b, t: (b, 0, 0)),
            scratch_shapes=[pltpu.VMEM((C, 1), jnp.float32)],
            compiler_params=make_cp(dimension_semantics=("parallel", "arbitrary")),
            cost_estimate=pl.CostEstimate(
                flops=2 * N * M + 4 * B * C * cr,
                transcendentals=B * C,
                bytes_accessed=2 * N * M * itemsize),
            input_output_aliases={0: 0} if donate_x else {},
        )(x3, w1, b1, w2, b2)
        return out.reshape(B, C, H, W)

    # --- fallback: pass 1 = squeeze + excitation gate --------------------------
    s = pl.pallas_call(
        functools.partial(_gate_kernel, inv_m=inv_m),
        out_shape=jax.ShapeDtypeStruct((B, C, 1), jnp.float32),
        grid=(B, n_m),
        in_specs=[pl.BlockSpec((1, C, m_tile), lambda b, t: (b, 0, t))]
                 + weight_specs,
        out_specs=pl.BlockSpec((1, C, 1), lambda b, t: (b, 0, 0)),
        scratch_shapes=[pltpu.VMEM((C, 1), jnp.float32)],
        compiler_params=make_cp(dimension_semantics=("parallel", "arbitrary")),
        cost_estimate=pl.CostEstimate(
            flops=N * M + 4 * B * C * cr,
            transcendentals=B * C,
            bytes_accessed=N * M * itemsize),
    )(x3, w1, b1, w2, b2)

    # --- fallback: pass 2 = lane-dense broadcast rescale ------------------------
    xf = x.reshape(N, M)
    sf = s.reshape(N, 1)
    m_tile_s = _pick_spatial_tile(M, 8, itemsize)
    row_tile = _pick_row_tile(N, m_tile_s, itemsize)
    out = pl.pallas_call(
        _scale_kernel,
        out_shape=jax.ShapeDtypeStruct((N, M), dtype),
        grid=(N // row_tile, M // m_tile_s),
        in_specs=[pl.BlockSpec((row_tile, m_tile_s), lambda r, t: (r, t)),
                  pl.BlockSpec((row_tile, 1), lambda r, t: (r, 0))],
        out_specs=pl.BlockSpec((row_tile, m_tile_s), lambda r, t: (r, t)),
        compiler_params=make_cp(dimension_semantics=("parallel", "parallel")),
        cost_estimate=pl.CostEstimate(
            flops=N * M, transcendentals=0,
            bytes_accessed=2 * N * M * itemsize + N * 4),
        input_output_aliases={0: 0} if donate_x else {},
    )(xf, sf)
    return out.reshape(B, C, H, W)


# ------------------------------------------------------------------ params ---

def init_params(key, channels, reduction=2):
    """Matches nn.Linear default init; kept in PyTorch (out_features, in) order."""
    cr = max(channels // reduction, 1)
    k1, k2, k3, k4 = jax.random.split(key, 4)
    bound1 = 1.0 / (channels ** 0.5)
    bound2 = 1.0 / (cr ** 0.5)
    w1 = jax.random.uniform(k1, (cr, channels), jnp.float32, -bound1, bound1)
    b1 = jax.random.uniform(k2, (cr, 1), jnp.float32, -bound1, bound1)
    w2 = jax.random.uniform(k3, (channels, cr), jnp.float32, -bound2, bound2)
    b2 = jax.random.uniform(k4, (channels, 1), jnp.float32, -bound2, bound2)
    return {"w1": w1, "b1": b1, "w2": w2, "b2": b2}


def _ref_forward(params, x):
    """Pure-JAX reference (f32 math, output cast back to x.dtype)."""
    xf = x.astype(jnp.float32)
    y = jnp.mean(xf, axis=(2, 3))                                      # (B, C)
    h = jnp.maximum(y @ params["w1"].T + params["b1"][:, 0], 0.0)
    s = jax.nn.sigmoid(h @ params["w2"].T + params["b2"][:, 0])
    return (xf * s[:, :, None, None]).astype(x.dtype)


# -------------------------------------------------------------------- main ---

if __name__ == "__main__":
    key = jax.random.PRNGKey(0)
    B, C, H, W = 2, 4, 16, 16
    k_x, k_p = jax.random.split(key)
    x = jax.random.normal(k_x, (B, C, H, W), jnp.float32)
    params = init_params(k_p, C, reduction=2)
    ref = _ref_forward(params, x)

    # 1) fused single-pass path (x fits in VMEM)
    fwd = jax.jit(lambda p, a: inse_attention(p, a))
    out = fwd(params, x)
    jax.block_until_ready(out)
    assert out.shape == x.shape and out.dtype == x.dtype
    assert bool(jnp.allclose(out, ref, atol=1e-5, rtol=1e-5))

    # 2) two-pass (gate + scale) fallback path
    fwd2 = jax.jit(lambda p, a: inse_attention(p, a, force_two_pass=True))
    out2 = fwd2(params, x)
    jax.block_until_ready(out2)
    assert bool(jnp.allclose(out2, ref, atol=1e-5, rtol=1e-5))

    # 3) bf16 I/O (accumulator / MLP stay f32)
    xb = x.astype(jnp.bfloat16)
    outb = fwd(params, xb)
    jax.block_until_ready(outb)
    assert outb.dtype == jnp.bfloat16
    refb = _ref_forward(params, xb.astype(jnp.float32))
    assert bool(jnp.allclose(outb.astype(jnp.float32), refb, atol=3e-2, rtol=3e-2))

    # 4) spatial size that is not a multiple of 128 (7x7 feature map)
    x7 = jax.random.normal(jax.random.PRNGKey(1), (2, 8, 7, 7), jnp.float32)
    p7 = init_params(jax.random.PRNGKey(2), 8, reduction=2)
    out7 = fwd(p7, x7)
    jax.block_until_ready(out7)
    assert bool(jnp.allclose(out7, _ref_forward(p7, x7), atol=1e-5, rtol=1e-5))

    print("KERNEL_OK")
</pallas_src>

<mosaic_0001>
module attributes {stable_mosaic.version = 11 : i64} {
  func.func @_fused_se_kernel(%arg0: i32, %arg1: i32, %arg2: memref<1x4x256xf32, #tpu.memory_space<vmem>>, %arg3: memref<2x4xf32, #tpu.memory_space<vmem>>, %arg4: memref<2x1xf32, #tpu.memory_space<vmem>>, %arg5: memref<4x2xf32, #tpu.memory_space<vmem>>, %arg6: memref<4x1xf32, #tpu.memory_space<vmem>>, %arg7: memref<1x4x256xf32, #tpu.memory_space<vmem>>, %arg8: memref<4x1xf32, #tpu.memory_space<vmem>>) attributes {dimension_semantics = [#tpu.dimension_semantics<parallel>, #tpu.dimension_semantics<arbitrary>], iteration_bounds = array<i64: 2, 1>, scalar_prefetch = 0 : i64, scratch_operands = 1 : i64, tpu.core_type = #tpu.core_type<tc>, window_params = [{transform_indices = @transform_0, window_bounds = array<i64: 1, 4, 256>}, {pipeline_mode = #tpu.pipeline_mode<synchronous>, transform_indices = @transform_1, window_bounds = array<i64: 2, 4>}, {pipeline_mode = #tpu.pipeline_mode<synchronous>, transform_indices = @transform_2, window_bounds = array<i64: 2, 1>}, {pipeline_mode = #tpu.pipeline_mode<synchronous>, transform_indices = @transform_3, window_bounds = array<i64: 4, 2>}, {pipeline_mode = #tpu.pipeline_mode<synchronous>, transform_indices = @transform_4, window_bounds = array<i64: 4, 1>}, {transform_indices = @transform_5, window_bounds = array<i64: 1, 4, 256>}]} {
    %c0_i32 = arith.constant 0 : i32
    %0 = arith.cmpi eq, %arg1, %c0_i32 : i32
    %1 = arith.extui %0 : i1 to i32
    %c0_i32_0 = arith.constant 0 : i32
    %2 = arith.cmpi ne, %1, %c0_i32_0 : i32
    scf.if %2 {
      %cst_11 = arith.constant 0.000000e+00 : f32
      %19 = vector.broadcast %cst_11 : f32 to vector<4x1xf32>
      %c0_12 = arith.constant 0 : index
      %c0_13 = arith.constant 0 : index
      %20 = vector.load %arg8[%c0_12, %c0_13] : memref<4x1xf32, #tpu.memory_space<vmem>>, vector<4x1xf32>
      tpu.vector_store %arg8[%c0_12, %c0_13], %19 {strides = array<i32>} : memref<4x1xf32, #tpu.memory_space<vmem>>, vector<4x1xf32>,
    } else {
    }
    %c0 = arith.constant 0 : index
    %c0_1 = arith.constant 0 : index
    %c0_2 = arith.constant 0 : index
    %3 = vector.load %arg2[%c0, %c0_1, %c0_2] : memref<1x4x256xf32, #tpu.memory_space<vmem>>, vector<1x4x256xf32>
    %4 = vector.shape_cast %3 : vector<1x4x256xf32> to vector<4x256xf32>
    %c0_3 = arith.constant 0 : index
    %c0_4 = arith.constant 0 : index
    %5 = vector.load %arg8[%c0_3, %c0_4] : memref<4x1xf32, #tpu.memory_space<vmem>>, vector<4x1xf32>
    %cst = arith.constant dense<0.000000e+00> : vector<4xf32>
    %6 = vector.multi_reduction <add>, %4, %cst [1] : vector<4x256xf32> to vector<4xf32>
    %7 = vector.shape_cast %6 : vector<4xf32> to vector<4x1xf32>
    %8 = arith.addf %5, %7 : vector<4x1xf32>
    %c0_5 = arith.constant 0 : index
    %c0_6 = arith.constant 0 : index
    %9 = vector.load %arg8[%c0_5, %c0_6] : memref<4x1xf32, #tpu.memory_space<vmem>>, vector<4x1xf32>
    tpu.vector_store %arg8[%c0_5, %c0_6], %8 {strides = array<i32>} : memref<4x1xf32, #tpu.memory_space<vmem>>, vector<4x1xf32>,
    %c256_i32 = arith.constant 256 : i32
    %10 = arith.muli %arg1, %c256_i32 : i32
    %11 = tpu.assume_multiple %10, 256 : i32
    %c0_7 = arith.constant 0 : index
    %c0_8 = arith.constant 0 : index
    %12 = arith.index_cast %11 : i32 to index
    %13 = vector.load %arg7[%c0_7, %c0_8, %12] : memref<1x4x256xf32, #tpu.memory_space<vmem>>, vector<1x4x256xf32>
    %14 = vector.shape_cast %13 : vector<1x4x256xf32> to vector<4x256xf32>
    %15 = vector.shape_cast %4 : vector<4x256xf32> to vector<1x4x256xf32>
    tpu.vector_store %arg7[%c0_7, %c0_8, %12], %15 {strides = array<i32>} : memref<1x4x256xf32, #tpu.memory_space<vmem>>, vector<1x4x256xf32>,
    %c0_i32_9 = arith.constant 0 : i32
    %16 = arith.cmpi eq, %arg1, %c0_i32_9 : i32
    %17 = arith.extui %16 : i1 to i32
    %c0_i32_10 = arith.constant 0 : i32
    %18 = arith.cmpi ne, %17, %c0_i32_10 : i32
    scf.if %18 {
      %c0_11 = arith.constant 0 : index
      %c0_12 = arith.constant 0 : index
      %19 = vector.load %arg8[%c0_11, %c0_12] : memref<4x1xf32, #tpu.memory_space<vmem>>, vector<4x1xf32>
      %cst_13 = arith.constant 3.906250e-03 : f32
      %20 = vector.broadcast %cst_13 : f32 to vector<4x1xf32>
      %21 = arith.mulf %19, %20 : vector<4x1xf32>
      %c0_14 = arith.constant 0 : index
      %c0_15 = arith.constant 0 : index
      %22 = vector.load %arg3[%c0_14, %c0_15] : memref<2x4xf32, #tpu.memory_space<vmem>>, vector<2x4xf32>
      %cst_16 = arith.constant dense<0.000000e+00> : vector<2x1xf32>
      %23 = tpu.matmul %22, %21, %cst_16 {dimension_numbers = #tpu.dot_dimension_numbers<[1], [0], [0], [1], [0, 0, 1, 1], [], []>} : vector<2x4xf32>, vector<4x1xf32>, vector<2x1xf32> -> vector<2x1xf32>
      %c0_17 = arith.constant 0 : index
      %c0_18 = arith.constant 0 : index
      %24 = vector.load %arg4[%c0_17, %c0_18] : memref<2x1xf32, #tpu.memory_space<vmem>>, vector<2x1xf32>
      %25 = arith.addf %23, %24 : vector<2x1xf32>
      %cst_19 = arith.constant 0.000000e+00 : f32
      %26 = vector.broadcast %cst_19 : f32 to vector<2x1xf32>
      %27 = arith.maximumf %25, %26 : vector<2x1xf32>
      %c0_20 = arith.constant 0 : index
      %c0_21 = arith.constant 0 : index
      %28 = vector.load %arg5[%c0_20, %c0_21] : memref<4x2xf32, #tpu.memory_space<vmem>>, vector<4x2xf32>
      %cst_22 = arith.constant dense<0.000000e+00> : vector<4x1xf32>
      %29 = tpu.matmul %28, %27, %cst_22 {dimension_numbers = #tpu.dot_dimension_numbers<[1], [0], [0], [1], [0, 0, 1, 1], [], []>} : vector<4x2xf32>, vector<2x1xf32>, vector<4x1xf32> -> vector<4x1xf32>
      %c0_23 = arith.constant 0 : index
      %c0_24 = arith.constant 0 : index
      %30 = vector.load %arg6[%c0_23, %c0_24] : memref<4x1xf32, #tpu.memory_space<vmem>>, vector<4x1xf32>
      %31 = arith.addf %29, %30 : vector<4x1xf32>
      %32 = arith.negf %31 : vector<4x1xf32>
      %33 = math.exp %32 : vector<4x1xf32>
      %cst_25 = arith.constant 1.000000e+00 : f32
      %34 = vector.broadcast %cst_25 : f32 to vector<4x1xf32>
      %35 = arith.addf %34, %33 : vector<4x1xf32>
      %36 = arith.divf %34, %35 : vector<4x1xf32>
      %c0_26 = arith.constant 0 : index
      %c0_27 = arith.constant 0 : index
      %c0_28 = arith.constant 0 : index
      %37 = vector.load %arg7[%c0_26, %c0_27, %c0_28] : memref<1x4x256xf32, #tpu.memory_space<vmem>>, vector<1x4x256xf32>
      %38 = vector.shape_cast %37 : vector<1x4x256xf32> to vector<4x256xf32>
      %39 = vector.broadcast %36 : vector<4x1xf32> to vector<4x256xf32>
      %40 = arith.mulf %38, %39 : vector<4x256xf32>
      %c0_29 = arith.constant 0 : index
      %c0_30 = arith.constant 0 : index
      %c0_31 = arith.constant 0 : index
      %41 = vector.load %arg7[%c0_29, %c0_30, %c0_31] : memref<1x4x256xf32, #tpu.memory_space<vmem>>, vector<1x4x256xf32>
      %42 = vector.shape_cast %41 : vector<1x4x256xf32> to vector<4x256xf32>
      %43 = vector.shape_cast %40 : vector<4x256xf32> to vector<1x4x256xf32>
      tpu.vector_store %arg7[%c0_29, %c0_30, %c0_31], %43 {strides = array<i32>} : memref<1x4x256xf32, #tpu.memory_space<vmem>>, vector<1x4x256xf32>,
    } else {
    }
    return
  }
  func.func @transform_0(%arg0: i32, %arg1: i32) -> (i32, i32, i32) {
    %c0_i32 = arith.constant 0 : i32
    %c0_i32_0 = arith.constant 0 : i32
    return %arg0, %c0_i32, %arg1 : i32, i32, i32
  }
  func.func @transform_1(%arg0: i32, %arg1: i32) -> (i32, i32) {
    %c0_i32 = arith.constant 0 : i32
    %c0_i32_0 = arith.constant 0 : i32
    %c0_i32_1 = arith.constant 0 : i32
    return %c0_i32, %c0_i32_0 : i32, i32
  }
  func.func @transform_2(%arg0: i32, %arg1: i32) -> (i32, i32) {
    %c0_i32 = arith.constant 0 : i32
    %c0_i32_0 = arith.constant 0 : i32
    %c0_i32_1 = arith.constant 0 : i32
    return %c0_i32, %c0_i32_0 : i32, i32
  }
  func.func @transform_3(%arg0: i32, %arg1: i32) -> (i32, i32) {
    %c0_i32 = arith.constant 0 : i32
    %c0_i32_0 = arith.constant 0 : i32
    %c0_i32_1 = arith.constant 0 : i32
    return %c0_i32, %c0_i32_0 : i32, i32
  }
  func.func @transform_4(%arg0: i32, %arg1: i32) -> (i32, i32) {
    %c0_i32 = arith.constant 0 : i32
    %c0_i32_0 = arith.constant 0 : i32
    %c0_i32_1 = arith.constant 0 : i32
    return %c0_i32, %c0_i32_0 : i32, i32
  }
  func.func @transform_5(%arg0: i32, %arg1: i32) -> (i32, i32, i32) {
    %c0_i32 = arith.constant 0 : i32
    %c0_i32_0 = arith.constant 0 : i32
    %c0_i32_1 = arith.constant 0 : i32
    return %arg0, %c0_i32, %c0_i32_0 : i32, i32, i32
  }
}

</mosaic_0001>

<llo_original>
// kernel: _lambda_.1
$region0: #{_lambda_.1}
  #allocation0 [shape = 'u32[]', space=smem, size = 0x4, offset = 0x4, fixed_abs, tag = 'smem constant byte address 0x4 - core index']
  #allocation1 [shape = 'u32[72,128]{1,0:T(1,128)}', space=vmem, size = 0x9000, scoped, tag = 'internal scratch']
  #allocation2 [shape = 'f32[4,1]{1,0:T(4,128)}', space=vmem, size = 0x800, scoped, tag = 'scratch operand']
  %s0 = inlined_call_operand.vmem [shape: f32[2,4,256], index: 0, kind: input, shape index: {}]
  %s1 = inlined_call_operand.vmem [shape: f32[2,4], index: 1, kind: input, shape index: {}]
  %s2 = inlined_call_operand.vmem [shape: f32[2,1], index: 2, kind: input, shape index: {}]
  %s3 = inlined_call_operand.vmem [shape: f32[4,2], index: 3, kind: input, shape index: {}]
  %s4 = inlined_call_operand.vmem [shape: f32[4,1], index: 4, kind: input, shape index: {}]
  %s5 = inlined_call_operand.vmem [shape: f32[2,4,256], index: 5, kind: output, shape index: {}]
  %s6 = sld [smem:[#allocation0]]
  $region61: #{_lambda_.1} parent=0
    _
  %s8 = ssub.s32 1, %s6
  %s9 = scalar_select 0, %s8, %s6
  loop: start=0, step=1, limit=4
  $region2: #{_lambda_.1} parent=0 // loop_pre_header
    _
  $region3: #{_lambda_.1} parent=0 // loop_header
    %s11 = sphi 0, %s15
    %p12 = scmp.ge.s32.totalorder %s11, 4
    %s18 = sphi 0, %s30
    %s19 = sphi 0, %s26
    %s20 = sphi 0, %s18
    %s21 = sphi 0, %s19
    %s22 = sphi 0, %s20
    %s23 = sphi 0, %s21
    %s35 = sphi 0, %s37
    %s38 = sphi 0, %s35
    %s39 = sphi 0, %s38
    %s55 = sphi 0, %s39
    %s59 = sphi 0, %s59
    %s61 = sphi 0, %s59
    %s62 = sphi 0, %s61
    %s76 = sphi 0, %s62
    %s80 = sphi 0, %s80
    %s82 = sphi 0, %s80
    %s83 = sphi 0, %s82
    %s97 = sphi 0, %s83
    %s101 = sphi 0, %s101
    %s103 = sphi 0, %s101
    %s104 = sphi 0, %s103
    %s118 = sphi 0, %s104
    %s122 = sphi 0, %s122
    %s124 = sphi 0, %s122
    %s125 = sphi 0, %s124
    %s139 = sphi 0, %s125
    %s145 = sphi 0, %s147
    %s148 = sphi 0, %s145
    %s149 = sphi 0, %s148
    %s165 = sphi 0, %s149
  $region4: #{_lambda_.1} parent=0 // loop_header_branch
    %14 = sbr.rel (%p12) target = $region8
  $region5: #{_lambda_.1} parent=0 // loop_body
    %s16 = ssub.s32 %s11, 1
    %s17 = ssub.s32 %s11, 2
    %s24 = sadd.s32 1, %s19
    %p25 = scmp.ge.s32.totalorder %s24, 1
    %s26 = scalar_select %p25, 0, %s24
    %s27 = sadd.s32 1, %s18
    %s28 = scalar_select %p25, %s27, %s18
    %p29 = scmp.ge.s32.totalorder %s28, 2
    %s30 = scalar_select %p29, 0, %s28
    %s31 = ssub.s32 %s18, %s30
    %s32 = ssub.s32 %s19, %s26
    %s33 = sor.u32 %s31, %s32
    %p34 = scmp.eq.s32.totalorder %s33, 0
    %s36 = sadd.s32 %s35, 1
    %s37 = scalar_select %p34, %s35, %s36
    %p40 = pneg %p34
    %p41 = scmp.eq.s32.totalorder %s11, 1
    %p42 = por %p40, %p41
    %p43 = scmp.ne.s32.totalorder %s35, %s38
    %p44 = scmp.eq.s32.totalorder %s11, 0
    %p45 = por %p43, %p44
    %p46 = scmp.ne.s32.totalorder %s35, %s38
    %p47 = scmp.eq.s32.totalorder %s16, 1
    %p48 = por %p46, %p47
    %p49 = scmp.ne.s32.totalorder %s38, %s39
    %p50 = scmp.eq.s32.totalorder %s16, 0
    %p51 = por %p49, %p50
    %p52 = scmp.ne.s32.totalorder %s38, %s39
    %p53 = scmp.eq.s32.totalorder %s17, 1
    %p54 = por %p52, %p53
    %p56 = scmp.ne.s32.totalorder %s39, %s55
    %p57 = scmp.eq.s32.totalorder %s17, 0
    %p58 = por %p56, %p57
    %s60 = sadd.s32 %s59, 1
    %p63 = scmp.eq.s32.totalorder %s11, 1
    %p64 = scmp.ne.s32.totalorder %s59, %s61
    %p65 = scmp.eq.s32.totalorder %s11, 0
    %p66 = por %p64, %p65
    %p67 = scmp.ne.s32.totalorder %s59, %s61
    %p68 = scmp.eq.s32.totalorder %s16, 1
    %p69 = por %p67, %p68
    %p70 = scmp.ne.s32.totalorder %s61, %s62
    %p71 = scmp.eq.s32.totalorder %s16, 0
    %p72 = por %p70, %p71
    %p73 = scmp.ne.s32.totalorder %s61, %s62
    %p74 = scmp.eq.s32.totalorder %s17, 1
    %p75 = por %p73, %p74
    %p77 = scmp.ne.s32.totalorder %s62, %s76
    %p78 = scmp.eq.s32.totalorder %s17, 0
    %p79 = por %p77, %p78
    %s81 = sadd.s32 %s80, 1
    %p84 = scmp.eq.s32.totalorder %s11, 1
    %p85 = scmp.ne.s32.totalorder %s80, %s82
    %p86 = scmp.eq.s32.totalorder %s11, 0
    %p87 = por %p85, %p86
    %p88 = scmp.ne.s32.totalorder %s80, %s82
    %p89 = scmp.eq.s32.totalorder %s16, 1
    %p90 = por %p88, %p89
    %p91 = scmp.ne.s32.totalorder %s82, %s83
    %p92 = scmp.eq.s32.totalorder %s16, 0
    %p93 = por %p91, %p92
    %p94 = scmp.ne.s32.totalorder %s82, %s83
    %p95 = scmp.eq.s32.totalorder %s17, 1
    %p96 = por %p94, %p95
    %p98 = scmp.ne.s32.totalorder %s83, %s97
    %p99 = scmp.eq.s32.totalorder %s17, 0
    %p100 = por %p98, %p99
    %s102 = sadd.s32 %s101, 1
    %p105 = scmp.eq.s32.totalorder %s11, 1
    %p106 = scmp.ne.s32.totalorder %s101, %s103
    %p107 = scmp.eq.s32.totalorder %s11, 0
    %p108 = por %p106, %p107
    %p109 = scmp.ne.s32.totalorder %s101, %s103
    %p110 = scmp.eq.s32.totalorder %s16, 1
    %p111 = por %p109, %p110
    %p112 = scmp.ne.s32.totalorder %s103, %s104
    %p113 = scmp.eq.s32.totalorder %s16, 0
    %p114 = por %p112, %p113
    %p115 = scmp.ne.s32.totalorder %s103, %s104
    %p116 = scmp.eq.s32.totalorder %s17, 1
    %p117 = por %p115, %p116
    %p119 = scmp.ne.s32.totalorder %s104, %s118
    %p120 = scmp.eq.s32.totalorder %s17, 0
    %p121 = por %p119, %p120
    %s123 = sadd.s32 %s122, 1
    %p126 = scmp.eq.s32.totalorder %s11, 1
    %p127 = scmp.ne.s32.totalorder %s122, %s124
    %p128 = scmp.eq.s32.totalorder %s11, 0
    %p129 = por %p127, %p128
    %p130 = scmp.ne.s32.totalorder %s122, %s124
    %p131 = scmp.eq.s32.totalorder %s16, 1
    %p132 = por %p130, %p131
    %p133 = scmp.ne.s32.totalorder %s124, %s125
    %p134 = scmp.eq.s32.totalorder %s16, 0
    %p135 = por %p133, %p134
    %p136 = scmp.ne.s32.totalorder %s124, %s125
    %p137 = scmp.eq.s32.totalorder %s17, 1
    %p138 = por %p136, %p137
    %p140 = scmp.ne.s32.totalorder %s125, %s139
    %p141 = scmp.eq.s32.totalorder %s17, 0
    %p142 = por %p140, %p141
    %s143 = ssub.s32 %s18, %s30
    %p144 = scmp.eq.s32.totalorder %s143, 0
    %s146 = sadd.s32 %s145, 1
    %s147 = scalar_select %p144, %s145, %s146
    %p150 = pneg %p144
    %p151 = scmp.eq.s32.totalorder %s11, 1
    %p152 = por %p150, %p151
    %p153 = scmp.ne.s32.totalorder %s145, %s148
    %p154 = scmp.eq.s32.totalorder %s11, 0
    %p155 = por %p153, %p154
    %p156 = scmp.ne.s32.totalorder %s145, %s148
    %p157 = scmp.eq.s32.totalorder %s16, 1
    %p158 = por %p156, %p157
    %p159 = scmp.ne.s32.totalorder %s148, %s149
    %p160 = scmp.eq.s32.totalorder %s16, 0
    %p161 = por %p159, %p160
    %p162 = scmp.ne.s32.totalorder %s148, %s149
    %p163 = scmp.eq.s32.totalorder %s17, 1
    %p164 = por %p162, %p163
    %p166 = scmp.ne.s32.totalorder %s149, %s165
    %p167 = scmp.eq.s32.totalorder %s17, 0
    %p168 = por %p166, %p167
    %p169 = scmp.le.s32.totalorder 1, %s11
    %p170 = scmp.lt.s32.totalorder %s11, 3
    %p171 = pnand %p169, %p170
    %p172 = pneg %p171
    // Predicated region
    $region9: #{_lambda_.1} parent=5 // pred_check
      _
    $region10: #{_lambda_.1} parent=5 // pred_check_branch
      %174 = sbr.rel (%p171) target = $region12
    $region11: #{_lambda_.1} parent=5 // pred_region
      %s175 = ssub.s32 %s11, 1
      // Predicated region
      $region13: #{_lambda_.1} parent=11 // pred_check
        %p176 = pneg %p72
      $region14: #{_lambda_.1} parent=11 // pred_check_branch
        %178 = sbr.rel (%p176) target = $region16
      $region15: #{_lambda_.1} parent=11 // pred_region
        _
      $region16: #{_lambda_.1} parent=11 // pred_fallthru
        _
      // Predicated region
      $region17: #{_lambda_.1} parent=11 // pred_check
        %p179 = pneg %p93
      $region18: #{_lambda_.1} parent=11 // pred_check_branch
        %181 = sbr.rel (%p179) target = $region20
      $region19: #{_lambda_.1} parent=11 // pred_region
        _
      $region20: #{_lambda_.1} parent=11 // pred_fallthru
        _
      // Predicated region
      $region21: #{_lambda_.1} parent=11 // pred_check
        %p182 = pneg %p114
      $region22: #{_lambda_.1} parent=11 // pred_check_branch
        %184 = sbr.rel (%p182) target = $region24
      $region23: #{_lambda_.1} parent=11 // pred_region
        _
      $region24: #{_lambda_.1} parent=11 // pred_fallthru
        _
      // Predicated region
      $region25: #{_lambda_.1} parent=11 // pred_check
        %p185 = pneg %p135
      $region26: #{_lambda_.1} parent=11 // pred_check_branch
        %187 = sbr.rel (%p185) target = $region28
      $region27: #{_lambda_.1} parent=11 // pred_region
        _
      $region28: #{_lambda_.1} parent=11 // pred_fallthru
        _
    $region12: #{_lambda_.1} parent=5 // pred_fallthru
      _
    %p188 = scmp.lt.s32.totalorder %s11, 2
    // Predicated region
    $region29: #{_lambda_.1} parent=5 // pred_check
      %p189 = pneg %p188
    $region30: #{_lambda_.1} parent=5 // pred_check_branch
      %191 = sbr.rel (%p189) target = $region32
    $region31: #{_lambda_.1} parent=5 // pred_region
      // Predicated region
      $region33: #{_lambda_.1} parent=31 // pred_check
        %p192 = pneg %p45
      $region34: #{_lambda_.1} parent=31 // pred_check_branch
        %194 = sbr.rel (%p192) target = $region36
      $region35: #{_lambda_.1} parent=31 // pred_region
        %s195 = smul.u32 2, %s19
        %p196 = scmp.lt.s32.totalorder %s18, 1
        %s197 = scalar_select %p196, %s18, 1
        %p198 = scmp.lt.s32.totalorder %s195, 1
        %s199 = scalar_select %p198, %s195, 1
        %s200 = smul.addr %s197, 2
        %s201 = sadd.s32 %s199, %s200
        %s202 = smul.addr %s201, 4
        %s203 = scalar_lea.vmem %s0, %s202
        %s204 = smul.u32 2, %s19
      $region36: #{_lambda_.1} parent=31 // pred_fallthru
        _
    $region32: #{_lambda_.1} parent=5 // pred_fallthru
      _
    %p205 = scmp.le.s32.totalorder 1, %s11
    %p206 = scmp.lt.s32.totalorder %s11, 3
    %p207 = pnand %p205, %p206
    %p208 = pneg %p207
    // Predicated region
    $region37: #{_lambda_.1} parent=5 // pred_check
      _
    $region38: #{_lambda_.1} parent=5 // pred_check_branch
      %210 = sbr.rel (%p207) target = $region40
    $region39: #{_lambda_.1} parent=5 // pred_region
      %s211 = ssub.s32 %s11, 1
      %s212 = smul.u32 2, %s21
      %p213 = scmp.lt.s32.totalorder %s20, 1
      %s214 = scalar_select %p213, %s20, 1
      %p215 = scmp.lt.s32.totalorder %s212, 1
      %s216 = scalar_select %p215, %s212, 1
      %s217 = smul.addr %s214, 2
      %s218 = sadd.s32 %s216, %s217
      %s219 = smul.addr %s218, 4
      %s220 = scalar_lea.vmem %s0, %s219
      %p221 = pneg %p51
      %p222 = pneg %p48
      %p223 = pneg %p72
      %p224 = pneg %p69
      %p225 = pneg %p93
      %p226 = pneg %p90
      %p227 = pneg %p114
      %p228 = pneg %p111
      %p229 = pneg %p135
      %p230 = pneg %p132
      %p231 = pneg %p161
      %p232 = pneg %p158
      %p233 = scmp.lt.s32.totalorder %s20, 1
      %s234 = scalar_select %p233, %s20, 1
      %s235 = smul.addr %s234, 2
      %s236 = smul.addr %s235, 4
      %s237 = scalar_lea.vmem %s5, %s236
      %s238 = smul.u32 2, %s21
      %p239 = scmp.lt.s32.totalorder %s20, 1
      %s240 = scalar_select %p239, %s20, 1
      %p241 = scmp.lt.s32.totalorder %s238, 1
      %s242 = scalar_select %p241, %s238, 1
      %s243 = smul.addr %s240, 2
      %s244 = sadd.s32 %s242, %s243
      %s245 = smul.addr %s244, 4
      %s246 = scalar_lea.vmem %s0, %s245
      %s247 = smul.u32 2, %s21
      %p248 = scmp.lt.s32.totalorder %s20, 1
      %s249 = scalar_select %p248, %s20, 1
      %s250 = smul.addr %s249, 2
      %s251 = smul.addr %s250, 4
      %s252 = scalar_lea.vmem %s5, %s251
      %p253 = scmp.eq.s32.totalorder %s21, 0
      // Predicated region
      $region41: #{_lambda_.1} parent=39 // pred_check
        %p254 = pneg %p253
      $region42: #{_lambda_.1} parent=39 // pred_check_branch
        %256 = sbr.rel (%p254) target = $region44
      $region43: #{_lambda_.1} parent=39 // pred_region
        %vm257 = vcmask 3072
        %258 = vst.msk [vmem:[#allocation2] sm:$0xf] %vm257, 0.0
      $region44: #{_lambda_.1} parent=39 // pred_fallthru
        _
      %v259 = vld [vmem:[%s246] sm:$0xff]
      %v260 = vld [vmem:[#allocation2] sm:$0xf]
      %262 = vst [vmem:[#allocation1] ss:$2 sm:$0xff] %v259
      %v263 = vld.sshfl [vmem:[#allocation1] sm:$0xff pattern:$0x75316420]
      %v264 = vld.sshfl [vmem:[#allocation1 + $0x8] sm:$0xff pattern:$0x75316420]
      %vm267 = vcmask 1043456
      %v268 = vsel %vm267, %v263, 0.0
      %v269 = vsel %vm267, %v264, 0.0
      %v270 = vadd.f32 %v268, %v269
      %271 = vadd.xlane.f32.xlu0 %v270
      %v272 = vpop.xlane.xlu0 %271
      %v273 = vadd.f32 %v260, %v272
      %vm274 = vcmask 3072
      %275 = vst.msk [vmem:[#allocation2] sm:$0xf] %vm274, %v273
      %s276 = smul.u32 %s21, 256
      %s277 = sshra.s32 %s276, 7
      %s278 = sand.u32 %s276, 127
      %s279 = smul.addr %s277, 4
      %s280 = scalar_lea.vmem %s252, %s279
      %281 = vst [vmem:[%s280] sm:$0xff] %v259
      // Predicated region
      $region45: #{_lambda_.1} parent=39 // pred_check
        %p282 = pneg %p253
      $region46: #{_lambda_.1} parent=39 // pred_check_branch
        %284 = sbr.rel (%p282) target = $region48
      $region47: #{_lambda_.1} parent=39 // pred_region
        %v285 = vld [vmem:[#allocation2] sm:$0xf]
        %v286 = vmul.f32 %v285, 0.00390625
        %v287 = vld [vmem:[%s1] sm:$0x3]
        %v288 = vld [vmem:[%s2] sm:$0x3]
        %vm289 = vcmask 31744
        %v291 = vsel %vm289, %v287, 0
        %v294 = vsel %vm267, %v286, 0
        %296 = vmatpush.msra.mxu0 0.0
        %297 = vmatpush.msra.mxu0 0.0
        %298 = vmatpush.msra.mxu0 0.0
        %299 = vmatpush.msra.mxu0 0.0
        %300 = vmatpush.msra.mxu0 0.0
        %301 = vmatpush.msra.mxu0 0.0
        %302 = vmatpush.msra.mxu0 0.0
        %303 = vmatpush.msra.mxu0 0.0
        %304 = vmatpush.msra.mxu0 0.0
        %305 = vmatpush.msra.mxu0 0.0
        %306 = vmatpush.msra.mxu0 0.0
        %307 = vmatpush.msra.mxu0 0.0
        %308 = vmatpush.msra.mxu0 0.0
        %309 = vmatpush.msra.mxu0 0.0
        %310 = vmatpush.msra.mxu0 0.0
        %311 = vmatpush.msra.mxu0 %v294
        %312 = vmatmul.f32.gmra.mxu0 %v291
        %v313 = vpop.f32.mrf.mxu0
        %v314 = vadd.f32 %v288, %v313
        %315 = vdwg.mxu0
        %v316 = vmax.f32 %v314, 0.0
        %v317 = vld [vmem:[%s3] sm:$0xf]
        %v318 = vld [vmem:[%s4] sm:$0xf]
        %vm319 = vcmask 15360
        %v321 = vsel %vm319, %v317, 0
        %vm323 = vcmask 1041408
        %v325 = vsel %vm323, %v316, 0
        %327 = vmatpush.msra.mxu0 0.0
        %328 = vmatpush.msra.mxu0 0.0
        %329 = vmatpush.msra.mxu0 0.0
        %330 = vmatpush.msra.mxu0 0.0
        %331 = vmatpush.msra.mxu0 0.0
        %332 = vmatpush.msra.mxu0 0.0
        %333 = vmatpush.msra.mxu0 0.0
        %334 = vmatpush.msra.mxu0 0.0
        %335 = vmatpush.msra.mxu0 0.0
        %336 = vmatpush.msra.mxu0 0.0
        %337 = vmatpush.msra.mxu0 0.0
        %338 = vmatpush.msra.mxu0 0.0
        %339 = vmatpush.msra.mxu0 0.0
        %340 = vmatpush.msra.mxu0 0.0
        %341 = vmatpush.msra.mxu0 0.0
        %342 = vmatpush.msra.mxu0 %v325
        %343 = vmatmul.f32.gmra.mxu0 %v321
        %v344 = vpop.f32.mrf.mxu0
        %v345 = vadd.f32 %v318, %v344
        %346 = vdwg.mxu0
        %v347 = vxor.u32 %v345, 2147483648
        %v348 = vmul.f32 %v347, 1.442695
        %v349 = vpow.pop %v348
        %v350 = vadd.f32 %v349, 1.0
        %v351 = vrcp.pop %v350
        %v352 = vmul.f32 %v350, %v351
        %v353 = vsub.f32 1.0, %v352
        %v354 = vmul.f32 %v351, %v353
        %v355 = vadd.f32 %v351, %v354
        %vm356 = vweird.f32 %v350
        %vm357 = vweird.f32 %v351
        %vm358 = vmor %vm356, %vm357
        %v359 = vsel %vm358, %v351, %v355
        %v360 = vand.u32 2147483647, %v350
        %vm361 = vcmp.eq.f32.partialorder %v360, 8.507059e+37
        %v362 = vand.u32 %v350, 2147483648
        %v363 = vor.u32 1.1754944e-38, %v362
        %v364 = vsel %vm361, %v363, %v359
        %v365 = vmul.f32 1.0, %v364
        %v366 = vld [vmem:[%s252] sm:$0xff]
        %368 = vset.pattern.permute.xlu0 0
        %369 = vperm.xlu0 %368, %v365
        %v370 = vpop.permute.xlu0 %369
        %v372 = vunpack.c.l.s4 839922192
        %v373 = vunpack.c.0.s8 %v372
        %v374 = vperm.slane %v370, %v373
        %v376 = vmul.f32 %v366, %v374
        %377 = vst [vmem:[%s252] sm:$0xff] %v376
      $region48: #{_lambda_.1} parent=39 // pred_fallthru
        _
      %p378 = scmp.lt.s32.totalorder %s20, 1
      %s379 = scalar_select %p378, %s20, 1
      %s380 = smul.addr %s379, 2
      %s381 = smul.addr %s380, 4
      %s382 = scalar_lea.vmem %s5, %s381
      // Predicated region
      $region49: #{_lambda_.1} parent=39 // pred_check
        %p383 = pneg %p158
      $region50: #{_lambda_.1} parent=39 // pred_check_branch
        %385 = sbr.rel (%p383) target = $region52
      $region51: #{_lambda_.1} parent=39 // pred_region
        _
      $region52: #{_lambda_.1} parent=39 // pred_fallthru
        _
    $region40: #{_lambda_.1} parent=5 // pred_fallthru
      _
    %p386 = scmp.le.s32.totalorder 2, %s11
    // Predicated region
    $region53: #{_lambda_.1} parent=5 // pred_check
      %p387 = pneg %p386
    $region54: #{_lambda_.1} parent=5 // pred_check_branch
      %389 = sbr.rel (%p387) target = $region56
    $region55: #{_lambda_.1} parent=5 // pred_region
      %s390 = ssub.s32 %s11, 2
      // Predicated region
      $region57: #{_lambda_.1} parent=55 // pred_check
        %p391 = pneg %p164
      $region58: #{_lambda_.1} parent=55 // pred_check_branch
        %393 = sbr.rel (%p391) target = $region60
      $region59: #{_lambda_.1} parent=55 // pred_region
        %p394 = scmp.lt.s32.totalorder %s22, 1
        %s395 = scalar_select %p394, %s22, 1
        %s396 = smul.addr %s395, 2
        %s397 = smul.addr %s396, 4
        %s398 = scalar_lea.vmem %s5, %s397
      $region60: #{_lambda_.1} parent=55 // pred_fallthru
        _
    $region56: #{_lambda_.1} parent=5 // pred_fallthru
      _
  $region6: #{_lambda_.1} parent=0 // loop_footer
    %s15 = sadd.s32 1, %s11
  $region7: #{_lambda_.1} parent=0 // loop_footer_branch
    %10 = sbr.rel target = $region3
  $region8: #{_lambda_.1} parent=0 // loop_exit
    _

</llo_original>
